<compile_context>
chip_gen: v7x
topology: tpu7x:2x2x1
jax: 0.10.0
libtpu: 0.0.40
codegen_flags: <defaults>
</compile_context>

<pallas_src>
import jax
import jax.numpy as jnp
from jax.experimental import pallas as pl
from jax.experimental.pallas import tpu as pltpu

DIMENSION = 4    # particle-state input dimension (matches the module's DIMENSION)
HIDDEN = 8       # hidden width fixed by the module definition
AUG_ROWS = 8     # augmented input rows: DIMENSION features + 1 ones-row + padding


def _round_up(x, m):
    return ((x + m - 1) // m) * m


def _softplus(z):
    # Numerically-stable softplus, matches torch.nn.Softplus (beta=1).
    return jnp.maximum(z, 0.0) + jnp.log1p(jnp.exp(-jnp.abs(z)))


def entropy_kernel(x_ref, w_ref, s_ref):
    x = x_ref[...].astype(jnp.float32)    # [8, TB]  rows 0..3 = x0^T, row 4 = 1, rest 0
    w = w_ref[...].astype(jnp.float32)    # [56, 8]  packed parameters

    # All lateral contributions + all biases in a single fused matmul:
    #   rows  0..7  : input_layer(x0)
    #   rows  8..15 : lateral_layer1(x0) + b_prop1
    #   rows 16..23 : lateral_layer2(x0) + b_prop2
    #   row  24     : lateral_layer_out(x0) + b_out
    lat = jnp.dot(w[0:32, :], x, preferred_element_type=jnp.float32)   # [32, TB]

    h = -_softplus(lat[0:8, :])                                        # layer 1
    h = -_softplus(jnp.dot(w[32:40, :], h,
                           preferred_element_type=jnp.float32)
                   + lat[8:16, :])                                     # layer 2
    h = -_softplus(jnp.dot(w[40:48, :], h,
                           preferred_element_type=jnp.float32)
                   + lat[16:24, :])                                    # layer 3
    y = jnp.dot(w[48:56, :], h,
                preferred_element_type=jnp.float32) + lat[24:32, :]    # layer 4
    s_ref[...] = (-_softplus(y[0:1, :])).astype(s_ref.dtype)           # row 0 is the real output


def init_params(key, dim=DIMENSION, hidden=HIDDEN, dtype=jnp.float32):
    """PyTorch-style (uniform +-1/sqrt(fan_in)) init; weights in nn.Linear layout
    [out_features, in_features], biases [out_features]."""
    layer_defs = {
        "input_layer": (dim, hidden),
        "prop_layer1": (hidden, hidden),
        "lateral_layer1": (dim, hidden),
        "prop_layer2": (hidden, hidden),
        "lateral_layer2": (dim, hidden),
        "output_layer": (hidden, 1),
        "lateral_layer_out": (dim, 1),
    }
    params = {}
    keys = jax.random.split(key, 2 * len(layer_defs))
    for i, (name, (fan_in, fan_out)) in enumerate(layer_defs.items()):
        bound = float(fan_in) ** -0.5
        w = jax.random.uniform(keys[2 * i], (fan_out, fan_in), dtype,
                               minval=-bound, maxval=bound)
        b = jax.random.uniform(keys[2 * i + 1], (fan_out,), dtype,
                               minval=-bound, maxval=bound)
        params[name] = (w, b)
    return params


def _pack_params(params):
    """Pack all weights/biases into one [56, 8] f32 array.

    Rows 0..31 ("lateral" block, multiplied by the augmented x tile):
      cols 0..3 = weight acting on x0, col 4 = folded bias, cols 5..7 = 0.
    Rows 32..55 ("prop" block): weights acting on the previous hidden state.
    """
    w_in, b_in = params["input_layer"]
    w_p1, b_p1 = params["prop_layer1"]
    w_l1, b_l1 = params["lateral_layer1"]
    w_p2, b_p2 = params["prop_layer2"]
    w_l2, b_l2 = params["lateral_layer2"]
    w_out, b_out = params["output_layer"]
    w_lo, b_lo = params["lateral_layer_out"]
    f32 = jnp.float32

    def lat_block(w, b):                       # w: [rows<=8, D], b: [rows<=8]
        rows = w.shape[0]
        blk = jnp.zeros((HIDDEN, AUG_ROWS), f32)
        blk = blk.at[:rows, :DIMENSION].set(w.astype(f32))
        blk = blk.at[:rows, DIMENSION].set(b.astype(f32))
        return blk

    def prop_block(w):                         # w: [rows<=8, HIDDEN]
        rows = w.shape[0]
        blk = jnp.zeros((HIDDEN, HIDDEN), f32)
        blk = blk.at[:rows, :].set(w.astype(f32))
        return blk

    return jnp.concatenate([
        lat_block(w_in, b_in),                 # rows  0..7
        lat_block(w_l1, b_l1 + b_p1),          # rows  8..15
        lat_block(w_l2, b_l2 + b_p2),          # rows 16..23
        lat_block(w_lo, b_lo + b_out),         # rows 24..31 (row 24 real)
        prop_block(w_p1),                      # rows 32..39
        prop_block(w_p2),                      # rows 40..47
        prop_block(w_out),                     # rows 48..55 (row 48 real)
    ], axis=0)                                 # [56, 8]


@jax.jit
def entropy_forward(x0, params):
    B, D = x0.shape
    assert D == DIMENSION

    # Lane-tile selection: single grid step for small/medium batches, 1024-lane tiles
    # (>=2 parallel steps, shardable across v7x's 2 TensorCores) for large batches.
    b_pad = _round_up(max(B, 1), 128)
    if b_pad <= 2048:
        tb = b_pad
    else:
        tb = 1024
        b_pad = _round_up(b_pad, tb)

    # Augmented, batch-on-lanes input: rows 0..3 = x0^T, row 4 = 1 (bias), rows 5..7 = 0.
    x_aug = jnp.zeros((AUG_ROWS, b_pad), jnp.float32)
    x_aug = x_aug.at[:DIMENSION, :B].set(x0.astype(jnp.float32).T)
    x_aug = x_aug.at[DIMENSION, :].set(1.0)

    w_packed = _pack_params(params)            # [56, 8]

    s_pad = pl.pallas_call(
        entropy_kernel,
        out_shape=jax.ShapeDtypeStruct((1, b_pad), x0.dtype),
        grid_spec=pltpu.PrefetchScalarGridSpec(
            num_scalar_prefetch=0,
            grid=(b_pad // tb,),
            in_specs=[
                pl.BlockSpec((AUG_ROWS, tb), lambda i: (0, i)),     # x, batch on lanes
                pl.BlockSpec(w_packed.shape, lambda i: (0, 0)),     # packed params, resident
            ],
            out_specs=pl.BlockSpec((1, tb), lambda i: (0, i)),      # lane-dense output
        ),
        compiler_params=pltpu.CompilerParams(
            dimension_semantics=("parallel",)),
    )(x_aug, w_packed)

    S = s_pad[0, :B].reshape(B, 1)

    # Post-use in-place weight mutation of the PyTorch forward (glue, not hot path):
    # W.data = -abs(W.data) for the prop/output layers.
    new_params = dict(params)
    for name in ("prop_layer1", "prop_layer2", "output_layer"):
        w, b = params[name]
        new_params[name] = (-jnp.abs(w), b)

    return S, new_params


def _ref_forward(x0, p):
    """Pure-JAX reference mirroring the PyTorch forward (pre-mutation weights)."""
    def lin(name, x):
        w, b = p[name]
        return x @ w.T + b
    h = -jax.nn.softplus(lin("input_layer", x0))
    h = -jax.nn.softplus(lin("prop_layer1", h) + lin("lateral_layer1", x0))
    h = -jax.nn.softplus(lin("prop_layer2", h) + lin("lateral_layer2", x0))
    return -jax.nn.softplus(lin("output_layer", h) + lin("lateral_layer_out", x0))


if __name__ == "__main__":
    key = jax.random.PRNGKey(0)
    k_x, k_p = jax.random.split(key)

    B = 16
    x0 = jax.random.normal(k_x, (B, DIMENSION), dtype=jnp.float32)
    params = init_params(k_p)

    S, updated_params = entropy_forward(x0, params)
    jax.block_until_ready(S)
    jax.block_until_ready(updated_params)

    S_ref = _ref_forward(x0, params)
    assert S.shape == (B, 1)
    assert bool(jnp.all(S <= 0.0))                       # -softplus(.) is always <= 0
    assert bool(jnp.allclose(S, S_ref, atol=1e-5, rtol=1e-5))
    print("KERNEL_OK")
</pallas_src>

<mosaic_0001>
module attributes {stable_mosaic.version = 11 : i64} {
  func.func @entropy_kernel(%arg0: i32, %arg1: memref<8x128xf32, #tpu.memory_space<vmem>>, %arg2: memref<56x8xf32, #tpu.memory_space<vmem>>, %arg3: memref<1x128xf32, #tpu.memory_space<vmem>>) attributes {dimension_semantics = [#tpu.dimension_semantics<parallel>], iteration_bounds = array<i64: 1>, scalar_prefetch = 0 : i64, scratch_operands = 0 : i64, tpu.core_type = #tpu.core_type<tc>, window_params = [{transform_indices = @transform_0, window_bounds = array<i64: 8, 128>}, {pipeline_mode = #tpu.pipeline_mode<synchronous>, transform_indices = @transform_1, window_bounds = array<i64: 56, 8>}, {transform_indices = @transform_2, window_bounds = array<i64: 1, 128>}]} {
    %c0 = arith.constant 0 : index
    %c0_0 = arith.constant 0 : index
    %0 = vector.load %arg1[%c0, %c0_0] : memref<8x128xf32, #tpu.memory_space<vmem>>, vector<8x128xf32>
    %c0_1 = arith.constant 0 : index
    %c0_2 = arith.constant 0 : index
    %1 = vector.load %arg2[%c0_1, %c0_2] : memref<56x8xf32, #tpu.memory_space<vmem>>, vector<56x8xf32>
    %2 = vector.extract_strided_slice %1 {offsets = [0, 0], sizes = [32, 8], strides = [1, 1]} : vector<56x8xf32> to vector<32x8xf32>
    %cst = arith.constant dense<0.000000e+00> : vector<32x128xf32>
    %3 = tpu.matmul %2, %0, %cst {dimension_numbers = #tpu.dot_dimension_numbers<[1], [0], [0], [1], [0, 0, 1, 1], [], []>} : vector<32x8xf32>, vector<8x128xf32>, vector<32x128xf32> -> vector<32x128xf32>
    %4 = vector.extract_strided_slice %3 {offsets = [0, 0], sizes = [8, 128], strides = [1, 1]} : vector<32x128xf32> to vector<8x128xf32>
    %cst_3 = arith.constant 0.000000e+00 : f32
    %5 = vector.broadcast %cst_3 : f32 to vector<8x128xf32>
    %6 = arith.maximumf %4, %5 : vector<8x128xf32>
    %7 = math.absf %4 : vector<8x128xf32>
    %cst_4 = arith.constant 0.000000e+00 : f32
    %8 = vector.broadcast %cst_4 : f32 to vector<8x128xf32>
    %9 = arith.subf %8, %7 : vector<8x128xf32>
    %10 = math.exp %9 : vector<8x128xf32>
    %11 = math.log1p %10 : vector<8x128xf32>
    %12 = arith.addf %6, %11 : vector<8x128xf32>
    %cst_5 = arith.constant 0.000000e+00 : f32
    %13 = vector.broadcast %cst_5 : f32 to vector<8x128xf32>
    %14 = arith.subf %13, %12 : vector<8x128xf32>
    %15 = vector.extract_strided_slice %1 {offsets = [32, 0], sizes = [8, 8], strides = [1, 1]} : vector<56x8xf32> to vector<8x8xf32>
    %cst_6 = arith.constant dense<0.000000e+00> : vector<8x128xf32>
    %16 = tpu.matmul %15, %14, %cst_6 {dimension_numbers = #tpu.dot_dimension_numbers<[1], [0], [0], [1], [0, 0, 1, 1], [], []>} : vector<8x8xf32>, vector<8x128xf32>, vector<8x128xf32> -> vector<8x128xf32>
    %17 = vector.extract_strided_slice %3 {offsets = [8, 0], sizes = [8, 128], strides = [1, 1]} : vector<32x128xf32> to vector<8x128xf32>
    %18 = arith.addf %16, %17 : vector<8x128xf32>
    %cst_7 = arith.constant 0.000000e+00 : f32
    %19 = vector.broadcast %cst_7 : f32 to vector<8x128xf32>
    %20 = arith.maximumf %18, %19 : vector<8x128xf32>
    %21 = math.absf %18 : vector<8x128xf32>
    %cst_8 = arith.constant 0.000000e+00 : f32
    %22 = vector.broadcast %cst_8 : f32 to vector<8x128xf32>
    %23 = arith.subf %22, %21 : vector<8x128xf32>
    %24 = math.exp %23 : vector<8x128xf32>
    %25 = math.log1p %24 : vector<8x128xf32>
    %26 = arith.addf %20, %25 : vector<8x128xf32>
    %cst_9 = arith.constant 0.000000e+00 : f32
    %27 = vector.broadcast %cst_9 : f32 to vector<8x128xf32>
    %28 = arith.subf %27, %26 : vector<8x128xf32>
    %29 = vector.extract_strided_slice %1 {offsets = [40, 0], sizes = [8, 8], strides = [1, 1]} : vector<56x8xf32> to vector<8x8xf32>
    %cst_10 = arith.constant dense<0.000000e+00> : vector<8x128xf32>
    %30 = tpu.matmul %29, %28, %cst_10 {dimension_numbers = #tpu.dot_dimension_numbers<[1], [0], [0], [1], [0, 0, 1, 1], [], []>} : vector<8x8xf32>, vector<8x128xf32>, vector<8x128xf32> -> vector<8x128xf32>
    %31 = vector.extract_strided_slice %3 {offsets = [16, 0], sizes = [8, 128], strides = [1, 1]} : vector<32x128xf32> to vector<8x128xf32>
    %32 = arith.addf %30, %31 : vector<8x128xf32>
    %cst_11 = arith.constant 0.000000e+00 : f32
    %33 = vector.broadcast %cst_11 : f32 to vector<8x128xf32>
    %34 = arith.maximumf %32, %33 : vector<8x128xf32>
    %35 = math.absf %32 : vector<8x128xf32>
    %cst_12 = arith.constant 0.000000e+00 : f32
    %36 = vector.broadcast %cst_12 : f32 to vector<8x128xf32>
    %37 = arith.subf %36, %35 : vector<8x128xf32>
    %38 = math.exp %37 : vector<8x128xf32>
    %39 = math.log1p %38 : vector<8x128xf32>
    %40 = arith.addf %34, %39 : vector<8x128xf32>
    %cst_13 = arith.constant 0.000000e+00 : f32
    %41 = vector.broadcast %cst_13 : f32 to vector<8x128xf32>
    %42 = arith.subf %41, %40 : vector<8x128xf32>
    %43 = vector.extract_strided_slice %1 {offsets = [48, 0], sizes = [8, 8], strides = [1, 1]} : vector<56x8xf32> to vector<8x8xf32>
    %cst_14 = arith.constant dense<0.000000e+00> : vector<8x128xf32>
    %44 = tpu.matmul %43, %42, %cst_14 {dimension_numbers = #tpu.dot_dimension_numbers<[1], [0], [0], [1], [0, 0, 1, 1], [], []>} : vector<8x8xf32>, vector<8x128xf32>, vector<8x128xf32> -> vector<8x128xf32>
    %45 = vector.extract_strided_slice %3 {offsets = [24, 0], sizes = [8, 128], strides = [1, 1]} : vector<32x128xf32> to vector<8x128xf32>
    %46 = arith.addf %44, %45 : vector<8x128xf32>
    %47 = vector.extract_strided_slice %46 {offsets = [0, 0], sizes = [1, 128], strides = [1, 1]} : vector<8x128xf32> to vector<1x128xf32>
    %cst_15 = arith.constant 0.000000e+00 : f32
    %48 = vector.broadcast %cst_15 : f32 to vector<1x128xf32>
    %49 = arith.maximumf %47, %48 : vector<1x128xf32>
    %50 = math.absf %47 : vector<1x128xf32>
    %cst_16 = arith.constant 0.000000e+00 : f32
    %51 = vector.broadcast %cst_16 : f32 to vector<1x128xf32>
    %52 = arith.subf %51, %50 : vector<1x128xf32>
    %53 = math.exp %52 : vector<1x128xf32>
    %54 = math.log1p %53 : vector<1x128xf32>
    %55 = arith.addf %49, %54 : vector<1x128xf32>
    %cst_17 = arith.constant 0.000000e+00 : f32
    %56 = vector.broadcast %cst_17 : f32 to vector<1x128xf32>
    %57 = arith.subf %56, %55 : vector<1x128xf32>
    %c0_18 = arith.constant 0 : index
    %c0_19 = arith.constant 0 : index
    %58 = vector.load %arg3[%c0_18, %c0_19] : memref<1x128xf32, #tpu.memory_space<vmem>>, vector<1x128xf32>
    tpu.vector_store %arg3[%c0_18, %c0_19], %57 {strides = array<i32>} : memref<1x128xf32, #tpu.memory_space<vmem>>, vector<1x128xf32>,
    return
  }
  func.func @transform_0(%arg0: i32) -> (i32, i32) {
    %c0_i32 = arith.constant 0 : i32
    %c0_i32_0 = arith.constant 0 : i32
    return %c0_i32, %arg0 : i32, i32
  }
  func.func @transform_1(%arg0: i32) -> (i32, i32) {
    %c0_i32 = arith.constant 0 : i32
    %c0_i32_0 = arith.constant 0 : i32
    %c0_i32_1 = arith.constant 0 : i32
    return %c0_i32, %c0_i32_0 : i32, i32
  }
  func.func @transform_2(%arg0: i32) -> (i32, i32) {
    %c0_i32 = arith.constant 0 : i32
    %c0_i32_0 = arith.constant 0 : i32
    return %c0_i32, %arg0 : i32, i32
  }
}

</mosaic_0001>

<llo_original>
// kernel: entropy_forward.1
$region0: #{entropy_forward.1}
  #allocation0 [shape = 'u32[]', space=smem, size = 0x4, offset = 0x4, fixed_abs, tag = 'smem constant byte address 0x4 - core index']
  #allocation1 [shape = 'u32[144,128]{1,0:T(1,128)}', space=vmem, size = 0x12000, scoped, tag = 'internal scratch']
  %s0 = inlined_call_operand.vmem [shape: f32[8,128], index: 0, kind: input, shape index: {}]
  %s1 = inlined_call_operand.vmem [shape: f32[56,8], index: 1, kind: input, shape index: {}]
  %s2 = inlined_call_operand.vmem [shape: f32[1,128], index: 2, kind: output, shape index: {}]
  %s3 = sld [smem:[#allocation0]]
  $region18: #{entropy_forward.1} parent=0
    _
  %s5 = ssub.s32 1, %s3
  %s6 = scalar_select 0, %s5, %s3
  // Predicated region
  $region2: #{entropy_forward.1} parent=0 // pred_check
    _
  $region3: #{entropy_forward.1} parent=0 // pred_check_branch
    %8 = sbr.rel (0) target = $region5
  $region4: #{entropy_forward.1} parent=0 // pred_region
    _
  $region5: #{entropy_forward.1} parent=0 // pred_fallthru
    _
  // Predicated region
  $region6: #{entropy_forward.1} parent=0 // pred_check
    _
  $region7: #{entropy_forward.1} parent=0 // pred_check_branch
    %10 = sbr.rel (0) target = $region9
  $region8: #{entropy_forward.1} parent=0 // pred_region
    _
  $region9: #{entropy_forward.1} parent=0 // pred_fallthru
    _
  %v11 = vld [vmem:[%s0] sm:$0xff]
  %v12 = vld [vmem:[%s1] sm:$0xff]
  %v13 = vld [vmem:[%s1 + $0x8] sm:$0xff]
  %v14 = vld [vmem:[%s1 + $0x10] sm:$0xff]
  %v15 = vld [vmem:[%s1 + $0x18] sm:$0xff]
  %v16 = vld [vmem:[%s1 + $0x20] sm:$0xff]
  %v17 = vld [vmem:[%s1 + $0x28] sm:$0xff]
  %v18 = vld [vmem:[%s1 + $0x30] sm:$0xff]
  %vm19 = vcmask 64512
  %v21 = vsel %vm19, %v12, 0
  %v24 = vsel %vm19, %v13, 0
  %v27 = vsel %vm19, %v14, 0
  %v30 = vsel %vm19, %v15, 0
  %32 = vmatprep.subr.mxu0 0.0
  %33 = vmatpush1.msra.mxu0 %v11
  %34 = vmatprep.subr.mxu0 0.0
  %35 = vmatpush1.msra.mxu0 0.0
  %36 = vmatprep.subr.mxu0 0.0
  %37 = vmatpush1.msra.mxu0 0.0
  %38 = vmatprep.subr.mxu0 0.0
  %39 = vmatpush1.msra.mxu0 0.0
  %40 = vmatprep.subr.mxu0 0.0
  %41 = vmatpush1.msra.mxu0 0.0
  %42 = vmatprep.subr.mxu0 0.0
  %43 = vmatpush1.msra.mxu0 0.0
  %44 = vmatprep.subr.mxu0 0.0
  %45 = vmatpush1.msra.mxu0 0.0
  %46 = vmatprep.subr.mxu0 0.0
  %47 = vmatpush1.msra.mxu0 0.0
  %48 = vmatprep.subr.mxu0 0.0
  %49 = vmatpush1.msra.mxu0 0.0
  %50 = vmatprep.subr.mxu0 0.0
  %51 = vmatpush1.msra.mxu0 0.0
  %52 = vmatprep.subr.mxu0 0.0
  %53 = vmatpush1.msra.mxu0 0.0
  %54 = vmatprep.subr.mxu0 0.0
  %55 = vmatpush1.msra.mxu0 0.0
  %56 = vmatprep.subr.mxu0 0.0
  %57 = vmatpush1.msra.mxu0 0.0
  %58 = vmatprep.subr.mxu0 0.0
  %59 = vmatpush1.msra.mxu0 0.0
  %60 = vmatprep.subr.mxu0 0.0
  %61 = vmatpush1.msra.mxu0 0.0
  %62 = vmatprep.subr.mxu0 0.0
  %63 = vmatpush1.msra.mxu0 0.0
  %64 = vmatprep.subr.mxu0 0.0
  %65 = vmatpush1.msra.mxu0 0.0
  %66 = vmatprep.subr.mxu0 0.0
  %67 = vmatpush1.msra.mxu0 0.0
  %68 = vmatprep.subr.mxu0 0.0
  %69 = vmatpush1.msra.mxu0 0.0
  %70 = vmatprep.subr.mxu0 0.0
  %71 = vmatpush1.msra.mxu0 0.0
  %72 = vmatprep.subr.mxu0 0.0
  %73 = vmatpush1.msra.mxu0 0.0
  %74 = vmatprep.subr.mxu0 0.0
  %75 = vmatpush1.msra.mxu0 0.0
  %76 = vmatprep.subr.mxu0 0.0
  %77 = vmatpush1.msra.mxu0 0.0
  %78 = vmatprep.subr.mxu0 0.0
  %79 = vmatpush1.msra.mxu0 0.0
  %80 = vmatprep.subr.mxu0 0.0
  %81 = vmatpush1.msra.mxu0 0.0
  %82 = vmatprep.subr.mxu0 0.0
  %83 = vmatpush1.msra.mxu0 0.0
  %84 = vmatprep.subr.mxu0 0.0
  %85 = vmatpush1.msra.mxu0 0.0
  %86 = vmatprep.subr.mxu0 0.0
  %87 = vmatpush1.msra.mxu0 0.0
  %88 = vmatprep.subr.mxu0 0.0
  %89 = vmatpush1.msra.mxu0 0.0
  %90 = vmatprep.subr.mxu0 0.0
  %91 = vmatpush1.msra.mxu0 0.0
  %92 = vmatprep.subr.mxu0 0.0
  %93 = vmatpush1.msra.mxu0 0.0
  %94 = vmatprep.subr.mxu0 0.0
  %95 = vmatpush1.msra.mxu0 0.0
  %96 = vmatprep.mubr.f32.mxu0 0.0
  %97 = vmatmul.mubr.f32.gmra.mrb[0].mxu0 %v21
  %v98 = vpop.f32.mrb[0].mxu0
  %v99 = vadd.f32 0.0, %v98
  %v100 = vpop.f32.mrb[0].mxu0
  %101 = vmatprep.mubr.f32.mxu0 0.0
  %102 = vmatmul.mubr.f32.gmra.mrb[0].mxu0 %v24
  %v103 = vpop.f32.mrb[0].mxu0
  %v104 = vadd.f32 0.0, %v103
  %v105 = vpop.f32.mrb[0].mxu0
  %106 = vmatprep.mubr.f32.mxu0 0.0
  %107 = vmatmul.mubr.f32.gmra.mrb[0].mxu0 %v27
  %v108 = vpop.f32.mrb[0].mxu0
  %v109 = vadd.f32 0.0, %v108
  %v110 = vpop.f32.mrb[0].mxu0
  %111 = vmatprep.mubr.f32.mxu0 0.0
  %112 = vmatmul.mubr.f32.gmra.mrb[0].mxu0 %v30
  %v113 = vpop.f32.mrb[0].mxu0
  %v114 = vadd.f32 0.0, %v113
  %v115 = vpop.f32.mrb[0].mxu0
  %116 = vdwg.mxu0
  %v117 = vmax.f32 %v99, 0.0
  %v118 = vand.u32 2147483647, %v99
  %v119 = vsub.f32 0.0, %v118
  %v120 = vmul.f32 %v119, 1.442695
  %v121 = vpow.pop %v120
  %v122 = vadd.f32 %v121, 1.0
  %v123 = vlog2.pop %v122
  %v124 = vmul.f32 %v123, 0.6931472
  %v125 = vmul.f32 -0.5, %v121
  %v126 = vadd.f32 %v125, 1.0
  %v127 = vmul.f32 %v126, %v121
  %v128 = vand.u32 2147483647, %v121
  %vm129 = vcmp.lt.f32.partialorder %v128, 0.0004427343
  %v130 = vsel %vm129, %v127, %v124
  %v131 = vadd.f32 %v117, %v130
  %v132 = vsub.f32 0.0, %v131
  %v134 = vsel %vm19, %v16, 0
  %136 = vmatprep.subr.mxu0 0.0
  %137 = vmatpush1.msra.mxu0 %v132
  %138 = vmatprep.subr.mxu0 0.0
  %139 = vmatpush1.msra.mxu0 0.0
  %140 = vmatprep.subr.mxu0 0.0
  %141 = vmatpush1.msra.mxu0 0.0
  %142 = vmatprep.subr.mxu0 0.0
  %143 = vmatpush1.msra.mxu0 0.0
  %144 = vmatprep.subr.mxu0 0.0
  %145 = vmatpush1.msra.mxu0 0.0
  %146 = vmatprep.subr.mxu0 0.0
  %147 = vmatpush1.msra.mxu0 0.0
  %148 = vmatprep.subr.mxu0 0.0
  %149 = vmatpush1.msra.mxu0 0.0
  %150 = vmatprep.subr.mxu0 0.0
  %151 = vmatpush1.msra.mxu0 0.0
  %152 = vmatprep.subr.mxu0 0.0
  %153 = vmatpush1.msra.mxu0 0.0
  %154 = vmatprep.subr.mxu0 0.0
  %155 = vmatpush1.msra.mxu0 0.0
  %156 = vmatprep.subr.mxu0 0.0
  %157 = vmatpush1.msra.mxu0 0.0
  %158 = vmatprep.subr.mxu0 0.0
  %159 = vmatpush1.msra.mxu0 0.0
  %160 = vmatprep.subr.mxu0 0.0
  %161 = vmatpush1.msra.mxu0 0.0
  %162 = vmatprep.subr.mxu0 0.0
  %163 = vmatpush1.msra.mxu0 0.0
  %164 = vmatprep.subr.mxu0 0.0
  %165 = vmatpush1.msra.mxu0 0.0
  %166 = vmatprep.subr.mxu0 0.0
  %167 = vmatpush1.msra.mxu0 0.0
  %168 = vmatprep.subr.mxu0 0.0
  %169 = vmatpush1.msra.mxu0 0.0
  %170 = vmatprep.subr.mxu0 0.0
  %171 = vmatpush1.msra.mxu0 0.0
  %172 = vmatprep.subr.mxu0 0.0
  %173 = vmatpush1.msra.mxu0 0.0
  %174 = vmatprep.subr.mxu0 0.0
  %175 = vmatpush1.msra.mxu0 0.0
  %176 = vmatprep.subr.mxu0 0.0
  %177 = vmatpush1.msra.mxu0 0.0
  %178 = vmatprep.subr.mxu0 0.0
  %179 = vmatpush1.msra.mxu0 0.0
  %180 = vmatprep.subr.mxu0 0.0
  %181 = vmatpush1.msra.mxu0 0.0
  %182 = vmatprep.subr.mxu0 0.0
  %183 = vmatpush1.msra.mxu0 0.0
  %184 = vmatprep.subr.mxu0 0.0
  %185 = vmatpush1.msra.mxu0 0.0
  %186 = vmatprep.subr.mxu0 0.0
  %187 = vmatpush1.msra.mxu0 0.0
  %188 = vmatprep.subr.mxu0 0.0
  %189 = vmatpush1.msra.mxu0 0.0
  %190 = vmatprep.subr.mxu0 0.0
  %191 = vmatpush1.msra.mxu0 0.0
  %192 = vmatprep.subr.mxu0 0.0
  %193 = vmatpush1.msra.mxu0 0.0
  %194 = vmatprep.subr.mxu0 0.0
  %195 = vmatpush1.msra.mxu0 0.0
  %196 = vmatprep.subr.mxu0 0.0
  %197 = vmatpush1.msra.mxu0 0.0
  %198 = vmatprep.subr.mxu0 0.0
  %199 = vmatpush1.msra.mxu0 0.0
  %200 = vmatprep.mubr.f32.mxu0 0.0
  %201 = vmatmul.mubr.f32.gmra.mrb[0].mxu0 %v134
  %v202 = vpop.f32.mrb[0].mxu0
  %v203 = vadd.f32 %v104, %v202
  %v204 = vpop.f32.mrb[0].mxu0
  %205 = vdwg.mxu0
  %v206 = vmax.f32 %v203, 0.0
  %v207 = vand.u32 2147483647, %v203
  %v208 = vsub.f32 0.0, %v207
  %v209 = vmul.f32 %v208, 1.442695
  %v210 = vpow.pop %v209
  %v211 = vadd.f32 %v210, 1.0
  %v212 = vlog2.pop %v211
  %v213 = vmul.f32 %v212, 0.6931472
  %v214 = vmul.f32 -0.5, %v210
  %v215 = vadd.f32 %v214, 1.0
  %v216 = vmul.f32 %v215, %v210
  %v217 = vand.u32 2147483647, %v210
  %vm218 = vcmp.lt.f32.partialorder %v217, 0.0004427343
  %v219 = vsel %vm218, %v216, %v213
  %v220 = vadd.f32 %v206, %v219
  %v221 = vsub.f32 0.0, %v220
  %v223 = vsel %vm19, %v17, 0
  %225 = vmatprep.subr.mxu0 0.0
  %226 = vmatpush1.msra.mxu0 %v221
  %227 = vmatprep.subr.mxu0 0.0
  %228 = vmatpush1.msra.mxu0 0.0
  %229 = vmatprep.subr.mxu0 0.0
  %230 = vmatpush1.msra.mxu0 0.0
  %231 = vmatprep.subr.mxu0 0.0
  %232 = vmatpush1.msra.mxu0 0.0
  %233 = vmatprep.subr.mxu0 0.0
  %234 = vmatpush1.msra.mxu0 0.0
  %235 = vmatprep.subr.mxu0 0.0
  %236 = vmatpush1.msra.mxu0 0.0
  %237 = vmatprep.subr.mxu0 0.0
  %238 = vmatpush1.msra.mxu0 0.0
  %239 = vmatprep.subr.mxu0 0.0
  %240 = vmatpush1.msra.mxu0 0.0
  %241 = vmatprep.subr.mxu0 0.0
  %242 = vmatpush1.msra.mxu0 0.0
  %243 = vmatprep.subr.mxu0 0.0
  %244 = vmatpush1.msra.mxu0 0.0
  %245 = vmatprep.subr.mxu0 0.0
  %246 = vmatpush1.msra.mxu0 0.0
  %247 = vmatprep.subr.mxu0 0.0
  %248 = vmatpush1.msra.mxu0 0.0
  %249 = vmatprep.subr.mxu0 0.0
  %250 = vmatpush1.msra.mxu0 0.0
  %251 = vmatprep.subr.mxu0 0.0
  %252 = vmatpush1.msra.mxu0 0.0
  %253 = vmatprep.subr.mxu0 0.0
  %254 = vmatpush1.msra.mxu0 0.0
  %255 = vmatprep.subr.mxu0 0.0
  %256 = vmatpush1.msra.mxu0 0.0
  %257 = vmatprep.subr.mxu0 0.0
  %258 = vmatpush1.msra.mxu0 0.0
  %259 = vmatprep.subr.mxu0 0.0
  %260 = vmatpush1.msra.mxu0 0.0
  %261 = vmatprep.subr.mxu0 0.0
  %262 = vmatpush1.msra.mxu0 0.0
  %263 = vmatprep.subr.mxu0 0.0
  %264 = vmatpush1.msra.mxu0 0.0
  %265 = vmatprep.subr.mxu0 0.0
  %266 = vmatpush1.msra.mxu0 0.0
  %267 = vmatprep.subr.mxu0 0.0
  %268 = vmatpush1.msra.mxu0 0.0
  %269 = vmatprep.subr.mxu0 0.0
  %270 = vmatpush1.msra.mxu0 0.0
  %271 = vmatprep.subr.mxu0 0.0
  %272 = vmatpush1.msra.mxu0 0.0
  %273 = vmatprep.subr.mxu0 0.0
  %274 = vmatpush1.msra.mxu0 0.0
  %275 = vmatprep.subr.mxu0 0.0
  %276 = vmatpush1.msra.mxu0 0.0
  %277 = vmatprep.subr.mxu0 0.0
  %278 = vmatpush1.msra.mxu0 0.0
  %279 = vmatprep.subr.mxu0 0.0
  %280 = vmatpush1.msra.mxu0 0.0
  %281 = vmatprep.subr.mxu0 0.0
  %282 = vmatpush1.msra.mxu0 0.0
  %283 = vmatprep.subr.mxu0 0.0
  %284 = vmatpush1.msra.mxu0 0.0
  %285 = vmatprep.subr.mxu0 0.0
  %286 = vmatpush1.msra.mxu0 0.0
  %287 = vmatprep.subr.mxu0 0.0
  %288 = vmatpush1.msra.mxu0 0.0
  %289 = vmatprep.mubr.f32.mxu0 0.0
  %290 = vmatmul.mubr.f32.gmra.mrb[0].mxu0 %v223
  %v291 = vpop.f32.mrb[0].mxu0
  %v292 = vadd.f32 %v109, %v291
  %v293 = vpop.f32.mrb[0].mxu0
  %294 = vdwg.mxu0
  %v295 = vmax.f32 %v292, 0.0
  %v296 = vand.u32 2147483647, %v292
  %v297 = vsub.f32 0.0, %v296
  %v298 = vmul.f32 %v297, 1.442695
  %v299 = vpow.pop %v298
  %v300 = vadd.f32 %v299, 1.0
  %v301 = vlog2.pop %v300
  %v302 = vmul.f32 %v301, 0.6931472
  %v303 = vmul.f32 -0.5, %v299
  %v304 = vadd.f32 %v303, 1.0
  %v305 = vmul.f32 %v304, %v299
  %v306 = vand.u32 2147483647, %v299
  %vm307 = vcmp.lt.f32.partialorder %v306, 0.0004427343
  %v308 = vsel %vm307, %v305, %v302
  %v309 = vadd.f32 %v295, %v308
  %v310 = vsub.f32 0.0, %v309
  %v312 = vsel %vm19, %v18, 0
  %314 = vmatprep.subr.mxu0 0.0
  %315 = vmatpush1.msra.mxu0 %v310
  %316 = vmatprep.subr.mxu0 0.0
  %317 = vmatpush1.msra.mxu0 0.0
  %318 = vmatprep.subr.mxu0 0.0
  %319 = vmatpush1.msra.mxu0 0.0
  %320 = vmatprep.subr.mxu0 0.0
  %321 = vmatpush1.msra.mxu0 0.0
  %322 = vmatprep.subr.mxu0 0.0
  %323 = vmatpush1.msra.mxu0 0.0
  %324 = vmatprep.subr.mxu0 0.0
  %325 = vmatpush1.msra.mxu0 0.0
  %326 = vmatprep.subr.mxu0 0.0
  %327 = vmatpush1.msra.mxu0 0.0
  %328 = vmatprep.subr.mxu0 0.0
  %329 = vmatpush1.msra.mxu0 0.0
  %330 = vmatprep.subr.mxu0 0.0
  %331 = vmatpush1.msra.mxu0 0.0
  %332 = vmatprep.subr.mxu0 0.0
  %333 = vmatpush1.msra.mxu0 0.0
  %334 = vmatprep.subr.mxu0 0.0
  %335 = vmatpush1.msra.mxu0 0.0
  %336 = vmatprep.subr.mxu0 0.0
  %337 = vmatpush1.msra.mxu0 0.0
  %338 = vmatprep.subr.mxu0 0.0
  %339 = vmatpush1.msra.mxu0 0.0
  %340 = vmatprep.subr.mxu0 0.0
  %341 = vmatpush1.msra.mxu0 0.0
  %342 = vmatprep.subr.mxu0 0.0
  %343 = vmatpush1.msra.mxu0 0.0
  %344 = vmatprep.subr.mxu0 0.0
  %345 = vmatpush1.msra.mxu0 0.0
  %346 = vmatprep.subr.mxu0 0.0
  %347 = vmatpush1.msra.mxu0 0.0
  %348 = vmatprep.subr.mxu0 0.0
  %349 = vmatpush1.msra.mxu0 0.0
  %350 = vmatprep.subr.mxu0 0.0
  %351 = vmatpush1.msra.mxu0 0.0
  %352 = vmatprep.subr.mxu0 0.0
  %353 = vmatpush1.msra.mxu0 0.0
  %354 = vmatprep.subr.mxu0 0.0
  %355 = vmatpush1.msra.mxu0 0.0
  %356 = vmatprep.subr.mxu0 0.0
  %357 = vmatpush1.msra.mxu0 0.0
  %358 = vmatprep.subr.mxu0 0.0
  %359 = vmatpush1.msra.mxu0 0.0
  %360 = vmatprep.subr.mxu0 0.0
  %361 = vmatpush1.msra.mxu0 0.0
  %362 = vmatprep.subr.mxu0 0.0
  %363 = vmatpush1.msra.mxu0 0.0
  %364 = vmatprep.subr.mxu0 0.0
  %365 = vmatpush1.msra.mxu0 0.0
  %366 = vmatprep.subr.mxu0 0.0
  %367 = vmatpush1.msra.mxu0 0.0
  %368 = vmatprep.subr.mxu0 0.0
  %369 = vmatpush1.msra.mxu0 0.0
  %370 = vmatprep.subr.mxu0 0.0
  %371 = vmatpush1.msra.mxu0 0.0
  %372 = vmatprep.subr.mxu0 0.0
  %373 = vmatpush1.msra.mxu0 0.0
  %374 = vmatprep.subr.mxu0 0.0
  %375 = vmatpush1.msra.mxu0 0.0
  %376 = vmatprep.subr.mxu0 0.0
  %377 = vmatpush1.msra.mxu0 0.0
  %378 = vmatprep.mubr.f32.mxu0 0.0
  %379 = vmatmul.mubr.f32.gmra.mrb[0].mxu0 %v312
  %v380 = vpop.f32.mrb[0].mxu0
  %v381 = vadd.f32 %v114, %v380
  %v382 = vpop.f32.mrb[0].mxu0
  %383 = vdwg.mxu0
  %v384 = vmax.f32 %v381, 0.0
  %v385 = vand.u32 2147483647, %v381
  %v386 = vsub.f32 0.0, %v385
  %v387 = vmul.f32 %v386, 1.442695
  %v388 = vpow.pop %v387
  %v389 = vadd.f32 %v388, 1.0
  %v390 = vlog2.pop %v389
  %v391 = vmul.f32 %v390, 0.6931472
  %v392 = vmul.f32 -0.5, %v388
  %v393 = vadd.f32 %v392, 1.0
  %v394 = vmul.f32 %v393, %v388
  %v395 = vand.u32 2147483647, %v388
  %vm396 = vcmp.lt.f32.partialorder %v395, 0.0004427343
  %v397 = vsel %vm396, %v394, %v391
  %v398 = vadd.f32 %v384, %v397
  %v399 = vsub.f32 0.0, %v398
  %400 = vst [vmem:[%s2] sm:$0x1] %v399
  // Predicated region
  $region10: #{entropy_forward.1} parent=0 // pred_check
    _
  $region11: #{entropy_forward.1} parent=0 // pred_check_branch
    %402 = sbr.rel (0) target = $region13
  $region12: #{entropy_forward.1} parent=0 // pred_region
    _
  $region13: #{entropy_forward.1} parent=0 // pred_fallthru
    _
  // Predicated region
  $region14: #{entropy_forward.1} parent=0 // pred_check
    _
  $region15: #{entropy_forward.1} parent=0 // pred_check_branch
    %404 = sbr.rel (0) target = $region17
  $region16: #{entropy_forward.1} parent=0 // pred_region
    _
  $region17: #{entropy_forward.1} parent=0 // pred_fallthru
    _

</llo_original>
